<compile_context>
chip_gen: v7x
topology: tpu7x:2x2x1
jax: 0.10.0
libtpu: 0.0.40
codegen_flags: <defaults>
</compile_context>

<pallas_src>
import jax
import jax.numpy as jnp
from jax.experimental import pallas as pl
from jax.experimental.pallas import tpu as pltpu


# ---------------------------------------------------------------------------
# Block sizing helpers.
# ---------------------------------------------------------------------------
def _sublane_pack(dtype):
    """Sublane packing unit: 8 for 4-byte, 16 for 2-byte, 32 for 1-byte dtypes."""
    return max(8, 32 // jnp.dtype(dtype).itemsize)


def _default_target_bytes():
    """Per-generation target for the combined (inputs + output) bytes touched per
    grid step.  Live VMEM ~= 2x this (double buffering), which stays below every
    generation's default scoped-VMEM limit (16 MiB v5e, 32 MiB v6e/v7x)."""
    try:
        kind = jax.devices()[0].device_kind.lower()
    except Exception:  # pragma: no cover - CPU/interpret fallback
        kind = ""
    if "v7" in kind:
        return 12 << 20   # 3.2 TB/s HBM: large blocks amortize ~0.35 us/step overhead
    if "v6" in kind:
        return 8 << 20
    return 4 << 20        # v5e: 16 MiB scoped-VMEM default caps block growth


def _pick_class_block(n_cls, row_bytes, out_dtype, target_bytes=None):
    """Largest class block whose per-step traffic is ~target_bytes, rounded UP to
    the output dtype's sublane pack (8/16/32) when not covering all classes."""
    if target_bytes is None:
        target_bytes = _default_target_bytes()
    pack = _sublane_pack(out_dtype)
    cb = max(1, int(round(target_bytes / max(1, row_bytes))))
    if cb >= n_cls:
        return int(n_cls)
    cb = max(pack, -(-cb // pack) * pack)   # round UP (VMEM targets leave 2x headroom)
    return int(min(cb, n_cls))


# ---------------------------------------------------------------------------
# Full prompt assembly (the literal forward()).
# ---------------------------------------------------------------------------
def _make_concat_kernel_2d(d, n_ctx):
    """Lane-dense path (requires D % 128 == 0): token axis folded into lanes."""
    ctx_w = n_ctx * d

    def kernel(prefix_ref, ctx_ref, suffix_ref, out_ref):
        # prefix_ref : (CB, D)          native dtype; cast on store (VPU, free)
        # ctx_ref    : (1, n_ctx*D)     shared block -> fetched once
        # suffix_ref : (CB, S_suf*D)
        # out_ref    : (CB, S_tot*D)    lane-dense output block
        cb = out_ref.shape[0]
        dt = out_ref.dtype
        # Three direct slice stores; no jnp.concatenate -> no multi-MiB temporary
        # spilled to VMEM.  All lane offsets are multiples of 128 -> unmasked.
        out_ref[:, :d] = prefix_ref[...].astype(dt)
        out_ref[:, d:d + ctx_w] = jnp.broadcast_to(
            ctx_ref[...].astype(dt), (cb, ctx_w))
        out_ref[:, d + ctx_w:] = suffix_ref[...].astype(dt)

    return kernel


def _make_concat_kernel_3d(n_ctx):
    """Fallback for D not a multiple of 128: keep the (class, token, D) layout."""

    def kernel(prefix_ref, ctx_ref, suffix_ref, out_ref):
        cb = out_ref.shape[0]
        d = out_ref.shape[2]
        dt = out_ref.dtype
        out_ref[:, :1, :] = prefix_ref[...].astype(dt)
        out_ref[:, 1:1 + n_ctx, :] = jnp.broadcast_to(
            ctx_ref[...].astype(dt), (cb, n_ctx, d))
        out_ref[:, 1 + n_ctx:, :] = suffix_ref[...].astype(dt)

    return kernel


def coop_prompt_forward(token_prefix, ctx, token_suffix, *, out_dtype=None,
                        class_block=None, target_block_bytes=None):
    """Pallas implementation of CoOp_PromptLearner.forward().

    token_prefix : (n_cls, 1, D)
    ctx          : (n_ctx, D)
    token_suffix : (n_cls, S_suf, D)
    returns      : (n_cls, 1 + n_ctx + S_suf, D)

    out_dtype: emit prompts in this dtype (e.g. bf16 if the downstream text
    encoder runs in bf16).  The cast happens inside the kernel, so the inputs are
    read from HBM exactly once in their native dtype.
    """
    n_cls, _, d = token_prefix.shape
    n_ctx = ctx.shape[0]
    s_suf = token_suffix.shape[1]
    s_tot = 1 + n_ctx + s_suf

    if out_dtype is None:
        out_dtype = jnp.result_type(token_prefix.dtype, ctx.dtype,
                                    token_suffix.dtype)
    out_dtype = jnp.dtype(out_dtype)

    # Degenerate configs (no learned ctx / no suffix / no classes): plain concat.
    if n_cls == 0 or n_ctx == 0 or s_suf == 0:
        ctx_b = jnp.broadcast_to(ctx[None].astype(out_dtype), (n_cls, n_ctx, d))
        return jnp.concatenate(
            [token_prefix.astype(out_dtype), ctx_b,
             token_suffix.astype(out_dtype)], axis=1)

    in_itemsize = max(jnp.dtype(a.dtype).itemsize
                      for a in (token_prefix, ctx, token_suffix))
    row_bytes = s_tot * d * (in_itemsize + out_dtype.itemsize)   # in + out per class
    cb = (class_block if class_block is not None else
          _pick_class_block(n_cls, row_bytes, out_dtype, target_block_bytes))
    cb = int(min(cb, n_cls))

    bytes_accessed = (token_prefix.size * jnp.dtype(token_prefix.dtype).itemsize
                      + ctx.size * jnp.dtype(ctx.dtype).itemsize
                      + token_suffix.size * jnp.dtype(token_suffix.dtype).itemsize
                      + n_cls * s_tot * d * out_dtype.itemsize)
    cost = pl.CostEstimate(flops=0, transcendentals=0,
                           bytes_accessed=int(bytes_accessed))
    cparams = pltpu.CompilerParams(dimension_semantics=("parallel",))
    grid = (pl.cdiv(n_cls, cb),)

    if d % 128 == 0:
        # Fast path: fold the token axis into the lane axis (contiguous reshape,
        # free) so every store is lane-dense and unmasked.
        prefix2d = token_prefix.reshape(n_cls, d)
        ctx2d = ctx.reshape(1, n_ctx * d)
        suffix2d = token_suffix.reshape(n_cls, s_suf * d)

        out2d = pl.pallas_call(
            _make_concat_kernel_2d(d, n_ctx),
            out_shape=jax.ShapeDtypeStruct((n_cls, s_tot * d), out_dtype),
            grid=grid,
            in_specs=[
                pl.BlockSpec((cb, d), lambda i: (i, 0)),            # per-class prefix
                pl.BlockSpec((1, n_ctx * d), lambda i: (0, 0)),     # shared ctx (fetched once)
                pl.BlockSpec((cb, s_suf * d), lambda i: (i, 0)),    # per-class suffix
            ],
            out_specs=pl.BlockSpec((cb, s_tot * d), lambda i: (i, 0)),
            compiler_params=cparams,
            cost_estimate=cost,
        )(prefix2d, ctx2d, suffix2d)
        return out2d.reshape(n_cls, s_tot, d)

    # Fallback: D not 128-aligned -> keep 3-D layout with full-extent token/D blocks.
    return pl.pallas_call(
        _make_concat_kernel_3d(n_ctx),
        out_shape=jax.ShapeDtypeStruct((n_cls, s_tot, d), out_dtype),
        grid=grid,
        in_specs=[
            pl.BlockSpec((cb, 1, d), lambda i: (i, 0, 0)),
            pl.BlockSpec((1, n_ctx, d), lambda i: (0, 0, 0)),
            pl.BlockSpec((cb, s_suf, d), lambda i: (i, 0, 0)),
        ],
        out_specs=pl.BlockSpec((cb, s_tot, d), lambda i: (i, 0, 0)),
        compiler_params=cparams,
        cost_estimate=cost,
    )(token_prefix, ctx[None], token_suffix)


# ---------------------------------------------------------------------------
# Training fast path: prefix/suffix are frozen, so rewrite only the ctx rows of
# a pre-baked prompts buffer.  The prompts buffer is aliased to the output and
# kept in HBM (memory_space=ANY) so it is never read; the kernel issues one
# strided manual DMA per class block that writes exactly rows [1 : 1+n_ctx].
# ---------------------------------------------------------------------------
def _make_ctx_update_kernel(cb, n_cls, n_ctx, d):
    def kernel(tmpl_hbm_ref, ctx_ref, out_hbm_ref, bcast_vmem, sem):
        del tmpl_hbm_ref                      # aliased to out_hbm_ref; never DMA'd
        i = pl.program_id(0)

        @pl.when(i == 0)
        def _():
            # Build the (CB, n_ctx, D) broadcast once; scratch persists across steps.
            bcast_vmem[...] = jnp.broadcast_to(
                ctx_ref[...][None, :, :], (cb, n_ctx, d))

        # Clamp the last (possibly partial) block; the overlap rewrites identical
        # broadcast values, so it is harmless.
        c0 = jnp.minimum(i * cb, n_cls - cb)
        cp = pltpu.make_async_copy(
            bcast_vmem,
            out_hbm_ref.at[pl.ds(c0, cb), pl.ds(1, n_ctx), :],
            sem)
        cp.start()
        cp.wait()

    return kernel


def coop_prompt_update_ctx(prompts, ctx, *, class_block=None,
                           target_block_bytes=None):
    """Return `prompts` with rows [1 : 1+n_ctx] replaced by the learned ctx
    (broadcast over classes).  prompts is aliased to the output and never read by
    the kernel, so HBM traffic is ~n_cls*n_ctx*D instead of n_cls*seq*D.  Donate
    `prompts` under jit to make the update truly in place (without donation XLA
    inserts a defensive copy: still correct, just loses the bandwidth saving)."""
    n_cls, s_tot, d = prompts.shape
    n_ctx = ctx.shape[0]
    if n_cls == 0 or n_ctx == 0:
        return prompts

    ctx = ctx.astype(prompts.dtype)
    itemsize = jnp.dtype(prompts.dtype).itemsize
    row_bytes = n_ctx * d * itemsize        # bytes written per class
    cb = (class_block if class_block is not None else
          _pick_class_block(n_cls, row_bytes, prompts.dtype, target_block_bytes))
    cb = int(min(cb, n_cls))

    bytes_accessed = (n_cls * n_ctx * d + n_ctx * d) * itemsize

    return pl.pallas_call(
        _make_ctx_update_kernel(cb, n_cls, n_ctx, d),
        out_shape=jax.ShapeDtypeStruct((n_cls, s_tot, d), prompts.dtype),
        grid=(pl.cdiv(n_cls, cb),),
        in_specs=[
            pl.BlockSpec(memory_space=pl.ANY),            # aliased prompts, no auto-DMA
            pl.BlockSpec((n_ctx, d), lambda i: (0, 0)),   # ctx, fetched once
        ],
        out_specs=pl.BlockSpec(memory_space=pl.ANY),
        scratch_shapes=[
            pltpu.VMEM((cb, n_ctx, d), prompts.dtype),    # broadcast staging buffer
            pltpu.SemaphoreType.DMA,
        ],
        input_output_aliases={0: 0},
        compiler_params=pltpu.CompilerParams(
            dimension_semantics=("arbitrary",),   # scratch init at step 0 must run first
            has_side_effects=True,
        ),
        cost_estimate=pl.CostEstimate(
            flops=0, transcendentals=0, bytes_accessed=int(bytes_accessed)),
    )(prompts, ctx)


if __name__ == "__main__":
    def run_case(n_cls, n_ctx, seq_len, d, in_dtype, out_dtype, key):
        s_suf = seq_len - 1 - n_ctx
        k_ctx, k_pre, k_suf = jax.random.split(key, 3)

        # Deterministic synthetic parameters / buffers (stand-ins for
        # clip_model.token_embedding outputs in __init__ / get_prefix_suffix_token).
        ctx_vectors = (0.02 * jax.random.normal(k_ctx, (n_ctx, d))).astype(in_dtype)
        token_prefix = jax.random.normal(k_pre, (n_cls, 1, d)).astype(in_dtype)
        token_suffix = jax.random.normal(k_suf, (n_cls, s_suf, d)).astype(in_dtype)

        # --- forward(): full prompt assembly -------------------------------
        prompts = coop_prompt_forward(token_prefix, ctx_vectors, token_suffix,
                                      out_dtype=out_dtype)
        prompts = jax.block_until_ready(prompts)

        ctx_exp = jnp.broadcast_to(ctx_vectors[None], (n_cls, n_ctx, d))
        ref = jnp.concatenate([token_prefix, ctx_exp, token_suffix],
                              axis=1).astype(prompts.dtype)
        assert prompts.shape == (n_cls, seq_len, d), prompts.shape
        assert jnp.array_equal(prompts, ref), "mismatch vs reference concat"

        # --- training fast path: rewrite only the learned ctx rows ---------
        ctx_new = (ctx_vectors.astype(jnp.float32) + 1.0).astype(in_dtype)
        prompts2 = coop_prompt_update_ctx(prompts, ctx_new)
        prompts2 = jax.block_until_ready(prompts2)

        ctx_new_exp = jnp.broadcast_to(ctx_new[None], (n_cls, n_ctx, d))
        ref2 = jnp.concatenate(
            [token_prefix.astype(prompts.dtype),
             ctx_new_exp.astype(prompts.dtype),
             token_suffix.astype(prompts.dtype)], axis=1)
        assert prompts2.shape == (n_cls, seq_len, d), prompts2.shape
        assert jnp.array_equal(prompts2, ref2), "mismatch vs reference ctx update"

    # Case 1: small CLIP-like shapes, D not a multiple of 128 -> 3-D fallback path.
    run_case(n_cls=4, n_ctx=4, seq_len=8, d=32,
             in_dtype=jnp.float32, out_dtype=jnp.float32,
             key=jax.random.PRNGKey(0))

    # Case 2: lane-dense fast path (D % 128 == 0) with in-kernel f32 -> bf16 cast.
    run_case(n_cls=16, n_ctx=4, seq_len=8, d=128,
             in_dtype=jnp.float32, out_dtype=jnp.bfloat16,
             key=jax.random.PRNGKey(0))

    print("KERNEL_OK")
</pallas_src>

<mosaic_0001>
module attributes {stable_mosaic.version = 11 : i64} {
  func.func @kernel(%arg0: i32, %arg1: memref<4x1x32xf32, #tpu.memory_space<vmem>>, %arg2: memref<1x4x32xf32, #tpu.memory_space<vmem>>, %arg3: memref<4x3x32xf32, #tpu.memory_space<vmem>>, %arg4: memref<4x8x32xf32, #tpu.memory_space<vmem>>) attributes {dimension_semantics = [#tpu.dimension_semantics<parallel>], iteration_bounds = array<i64: 1>, scalar_prefetch = 0 : i64, scratch_operands = 0 : i64, tpu.core_type = #tpu.core_type<tc>, window_params = [{transform_indices = @transform_0, window_bounds = array<i64: 4, 1, 32>}, {pipeline_mode = #tpu.pipeline_mode<synchronous>, transform_indices = @transform_1, window_bounds = array<i64: 1, 4, 32>}, {transform_indices = @transform_2, window_bounds = array<i64: 4, 3, 32>}, {transform_indices = @transform_3, window_bounds = array<i64: 4, 8, 32>}]} {
    %c0 = arith.constant 0 : index
    %c0_0 = arith.constant 0 : index
    %c0_1 = arith.constant 0 : index
    %0 = vector.load %arg1[%c0, %c0_0, %c0_1] : memref<4x1x32xf32, #tpu.memory_space<vmem>>, vector<4x1x32xf32>
    %c0_2 = arith.constant 0 : index
    %c0_3 = arith.constant 0 : index
    %c0_4 = arith.constant 0 : index
    %1 = vector.load %arg4[%c0_2, %c0_3, %c0_4] : memref<4x8x32xf32, #tpu.memory_space<vmem>>, vector<4x1x32xf32>
    tpu.vector_store %arg4[%c0_2, %c0_3, %c0_4], %0 {strides = array<i32>} : memref<4x8x32xf32, #tpu.memory_space<vmem>>, vector<4x1x32xf32>,
    %c0_5 = arith.constant 0 : index
    %c0_6 = arith.constant 0 : index
    %c0_7 = arith.constant 0 : index
    %2 = vector.load %arg2[%c0_5, %c0_6, %c0_7] : memref<1x4x32xf32, #tpu.memory_space<vmem>>, vector<1x4x32xf32>
    %3 = vector.shape_cast %2 : vector<1x4x32xf32> to vector<1x4x32xf32>
    %4 = vector.broadcast %3 : vector<1x4x32xf32> to vector<4x4x32xf32>
    %c0_8 = arith.constant 0 : index
    %c1 = arith.constant 1 : index
    %c0_9 = arith.constant 0 : index
    %5 = vector.load %arg4[%c0_8, %c1, %c0_9] : memref<4x8x32xf32, #tpu.memory_space<vmem>>, vector<4x4x32xf32>
    tpu.vector_store %arg4[%c0_8, %c1, %c0_9], %4 {strides = array<i32>} : memref<4x8x32xf32, #tpu.memory_space<vmem>>, vector<4x4x32xf32>,
    %c0_10 = arith.constant 0 : index
    %c0_11 = arith.constant 0 : index
    %c0_12 = arith.constant 0 : index
    %6 = vector.load %arg3[%c0_10, %c0_11, %c0_12] : memref<4x3x32xf32, #tpu.memory_space<vmem>>, vector<4x3x32xf32>
    %c0_13 = arith.constant 0 : index
    %c5 = arith.constant 5 : index
    %c0_14 = arith.constant 0 : index
    %7 = vector.load %arg4[%c0_13, %c5, %c0_14] : memref<4x8x32xf32, #tpu.memory_space<vmem>>, vector<4x3x32xf32>
    tpu.vector_store %arg4[%c0_13, %c5, %c0_14], %6 {strides = array<i32>} : memref<4x8x32xf32, #tpu.memory_space<vmem>>, vector<4x3x32xf32>,
    return
  }
  func.func @transform_0(%arg0: i32) -> (i32, i32, i32) {
    %c0_i32 = arith.constant 0 : i32
    %c0_i32_0 = arith.constant 0 : i32
    %c0_i32_1 = arith.constant 0 : i32
    return %arg0, %c0_i32, %c0_i32_0 : i32, i32, i32
  }
  func.func @transform_1(%arg0: i32) -> (i32, i32, i32) {
    %c0_i32 = arith.constant 0 : i32
    %c0_i32_0 = arith.constant 0 : i32
    %c0_i32_1 = arith.constant 0 : i32
    %c0_i32_2 = arith.constant 0 : i32
    return %c0_i32, %c0_i32_0, %c0_i32_1 : i32, i32, i32
  }
  func.func @transform_2(%arg0: i32) -> (i32, i32, i32) {
    %c0_i32 = arith.constant 0 : i32
    %c0_i32_0 = arith.constant 0 : i32
    %c0_i32_1 = arith.constant 0 : i32
    return %arg0, %c0_i32, %c0_i32_0 : i32, i32, i32
  }
  func.func @transform_3(%arg0: i32) -> (i32, i32, i32) {
    %c0_i32 = arith.constant 0 : i32
    %c0_i32_0 = arith.constant 0 : i32
    %c0_i32_1 = arith.constant 0 : i32
    return %arg0, %c0_i32, %c0_i32_0 : i32, i32, i32
  }
}

</mosaic_0001>

<llo_original>
// kernel: tpu_custom_call.1
$region0: #{tpu_custom_call.1}
  #allocation0 [shape = 'u32[]', space=smem, size = 0x4, offset = 0x4, fixed_abs, tag = 'smem constant byte address 0x4 - core index']
  #allocation1 [shape = 'u32[144,128]{1,0:T(1,128)}', space=vmem, size = 0x12000, scoped, tag = 'internal scratch']
  %s0 = inlined_call_operand.vmem [shape: f32[4,1,32], index: 0, kind: input, shape index: {}]
  %s1 = inlined_call_operand.vmem [shape: f32[1,4,32], index: 1, kind: input, shape index: {}]
  %s2 = inlined_call_operand.vmem [shape: f32[4,3,32], index: 2, kind: input, shape index: {}]
  %s3 = inlined_call_operand.hbm [shape: f32[4,8,32], index: 3, kind: output, shape index: {}]
  %s4 = sld [smem:[#allocation0]]
  $region22: #{tpu_custom_call.1} parent=0
    _
  %s6 = ssub.s32 1, %s4
  %s7 = scalar_select 0, %s6, %s4
  $region1: #{tpu_custom_call.1} parent=0
    #allocation2 [shape = 'u8[16384]{0}', space=vmem, size = 0x4000, scoped, tag = 'output window, operand 0, single buffered']
    #allocation3 [shape = 's32[1]{0}', space=sflag, size = 0x4, scoped, tag = 'scoped memory for tpu_custom_call.1']
    %8 = vsyncpa [#allocation3], 0
    // Predicated region
    $region2: #{tpu_custom_call.1} parent=1 // pred_check
      _
    $region3: #{tpu_custom_call.1} parent=1 // pred_check_branch
      %10 = sbr.rel (0) target = $region5
    $region4: #{tpu_custom_call.1} parent=1 // pred_region
      _
    $region5: #{tpu_custom_call.1} parent=1 // pred_fallthru
      _
    // Predicated region
    $region6: #{tpu_custom_call.1} parent=1 // pred_check
      _
    $region7: #{tpu_custom_call.1} parent=1 // pred_check_branch
      %12 = sbr.rel (0) target = $region9
    $region8: #{tpu_custom_call.1} parent=1 // pred_region
      _
    $region9: #{tpu_custom_call.1} parent=1 // pred_fallthru
      _
    // Predicated region
    $region10: #{tpu_custom_call.1} parent=1 // pred_check
      _
    $region11: #{tpu_custom_call.1} parent=1 // pred_check_branch
      %14 = sbr.rel (0) target = $region13
    $region12: #{tpu_custom_call.1} parent=1 // pred_region
      _
    $region13: #{tpu_custom_call.1} parent=1 // pred_fallthru
      _
    %v15 = vld [vmem:[%s0] sm:$0x1]
    %v16 = vld [vmem:[%s0 + $0x1] sm:$0x1]
    %v17 = vld [vmem:[%s0 + $0x2] sm:$0x1]
    %v18 = vld [vmem:[%s0 + $0x3] sm:$0x1]
    %vm19 = vcmask 253952
    %20 = vst.msk [vmem:[#allocation2] sm:$0x1] %vm19, %v15
    %21 = vst.msk [vmem:[#allocation2 + $0x8] sm:$0x1] %vm19, %v16
    %22 = vst.msk [vmem:[#allocation2 + $0x10] sm:$0x1] %vm19, %v17
    %23 = vst.msk [vmem:[#allocation2 + $0x18] sm:$0x1] %vm19, %v18
    %v24 = vld [vmem:[%s1] sm:$0xf]
    %vm25 = vcmask 257024
    %26 = vst.msk [vmem:[#allocation2 + $0x1] sm:$0xf] %vm25, %v24
    %27 = vst.msk [vmem:[#allocation2 + $0x9] sm:$0xf] %vm25, %v24
    %28 = vst.msk [vmem:[#allocation2 + $0x11] sm:$0xf] %vm25, %v24
    %29 = vst.msk [vmem:[#allocation2 + $0x19] sm:$0xf] %vm25, %v24
    %v30 = vld [vmem:[%s2] sm:$0x7]
    %v31 = vld [vmem:[%s2 + $0x4] sm:$0x7]
    %v32 = vld [vmem:[%s2 + $0x8] sm:$0x7]
    %v33 = vld [vmem:[%s2 + $0xc] sm:$0x7]
    %vm34 = vcmask 256000
    %35 = vst.msk [vmem:[#allocation2 + $0x5] sm:$0x7] %vm34, %v30
    %36 = vst.msk [vmem:[#allocation2 + $0xd] sm:$0x7] %vm34, %v31
    %37 = vst.msk [vmem:[#allocation2 + $0x15] sm:$0x7] %vm34, %v32
    %38 = vst.msk [vmem:[#allocation2 + $0x1d] sm:$0x7] %vm34, %v33
    // Predicated region
    $region14: #{tpu_custom_call.1} parent=1 // pred_check
      _
    $region15: #{tpu_custom_call.1} parent=1 // pred_check_branch
      %40 = sbr.rel (0) target = $region17
    $region16: #{tpu_custom_call.1} parent=1 // pred_region
      %s42 = ssub.s32 512, 512
      %43 = vsyncadd [#allocation3], %s42
      %s44 = sshll.u32 [#allocation2], 4
      %s45 = int_to_ptr.vmem [resolvable:$true] %s44
      %50 = dma.vmem_to_hbm [thread:$0]  %s45, 512, %s3, [#allocation3], 128, 128, 8
    $region17: #{tpu_custom_call.1} parent=1 // pred_fallthru
      _
    // Predicated region
    $region18: #{tpu_custom_call.1} parent=1 // pred_check
      _
    $region19: #{tpu_custom_call.1} parent=1 // pred_check_branch
      %52 = sbr.rel (0) target = $region21
    $region20: #{tpu_custom_call.1} parent=1 // pred_region
      %53 = dma.done [#allocation3], 512
    $region21: #{tpu_custom_call.1} parent=1 // pred_fallthru
      _
    %54 = vsyncpa [#allocation3], 1

</llo_original>
